<compile_context>
chip_gen: v6e
topology: v6e:2x2x1
jax: 0.10.0
libtpu: 0.0.40
codegen_flags: <defaults>
</compile_context>

<pallas_src>
import functools

import jax
import jax.numpy as jnp
from jax import lax
from jax.experimental import pallas as pl
from jax.experimental.pallas import tpu as pltpu


def lstm_head_kernel(xf_ref, w_ref, bias_ref, o_ref, *,
                     batch, seq_len, hidden, feat, out_dim):
    """Fused forward: hoisted input projection + unrolled recurrence + Linear+Sigmoid head."""
    B, T, H, F = batch, seq_len, hidden, feat

    # ---- one-time setup (off the serial chain) ------------------------------------
    w_ih = w_ref[0:F, :]                     # (F, 4H)  bf16, i/f/o columns pre-scaled by 0.5
    w_hh = w_ref[F:F + H, :]                 # (H, 4H)  bf16, i/f/o columns pre-scaled by 0.5
    w_out = w_ref[F + H:F + 2 * H, :]        # (H, 4H)  bf16, 0.5*W_out in cols [:out_dim], rest 0

    b_row = bias_ref[0:1, :]                 # (1, 4H)  f32, i/f/o sections pre-scaled by 0.5
    post_scale = bias_ref[2:3, :]            # [0.5 | 0.5 | 1.0 | 0.5] per gate-lane group
    post_bias = bias_ref[3:4, :]             # [0.5 | 0.5 | 0.0 | 0.5]

    # Hoisted input projection: one MXU call for all T*B rows (time-major layout).
    gates_x = jnp.dot(xf_ref[...], w_ih,
                      preferred_element_type=jnp.float32) + b_row      # (T*B, 4H) f32

    c = jnp.zeros((B, H), jnp.float32)
    h_bf16 = jnp.zeros((B, H), jnp.bfloat16)

    # ---- recurrence, fully unrolled; gate order i, f, g, o (PyTorch) ---------------
    for t in range(T):
        if t == 0:
            g_half = gates_x[0:B, :]                       # h0 == 0 -> skip the recurrent matmul
        else:
            g_half = gates_x[t * B:(t + 1) * B, :] + jnp.dot(
                h_bf16, w_hh, preferred_element_type=jnp.float32)       # (B, 4H) f32

        # sigma(x) = 0.5*tanh(x/2) + 0.5 ; g-gate lanes are un-scaled -> plain tanh.
        acts = jnp.tanh(g_half) * post_scale + post_bias                # single EUP pass on 4H lanes
        i_g = acts[:, 0 * H:1 * H]
        f_g = acts[:, 1 * H:2 * H]
        g_g = acts[:, 2 * H:3 * H]
        o_g = acts[:, 3 * H:4 * H]

        c = f_g * c + i_g * g_g
        h = o_g * jnp.tanh(c)
        h_bf16 = h.astype(jnp.bfloat16)      # pack early so it overlaps the step tail (v5e)

    # ---- head: Linear(H, out_dim) + Sigmoid on the last hidden state ----------------
    y_half = (jnp.dot(h_bf16, w_out, preferred_element_type=jnp.float32)[:, :out_dim]
              + bias_ref[1:2, :out_dim])                                # == y / 2
    o_ref[...] = jnp.tanh(y_half) * 0.5 + 0.5                           # == sigmoid(y)


def init_params(key, feature_dim, hidden, out_dim):
    """Deterministic init mimicking PyTorch's uniform(-1/sqrt(H), 1/sqrt(H))."""
    ks = jax.random.split(key, 6)
    k = 1.0 / jnp.sqrt(hidden)
    u = lambda kk, shape: jax.random.uniform(kk, shape, jnp.float32, -k, k)
    w_ih = u(ks[0], (4 * hidden, feature_dim))   # PyTorch weight_ih_l0
    w_hh = u(ks[1], (4 * hidden, hidden))        # PyTorch weight_hh_l0
    b_ih = u(ks[2], (4 * hidden,))
    b_hh = u(ks[3], (4 * hidden,))
    w_out = u(ks[4], (out_dim, hidden))          # PyTorch Linear weight
    b_out = u(ks[5], (out_dim,))
    return {
        "w_ih_t": w_ih.T,                                 # (F, 4H)
        "w_hh_t": w_hh.T,                                 # (H, 4H)
        "b": (b_ih + b_hh).reshape(1, 4 * hidden),        # (1, 4H)  == b_ih + b_hh
        "w_out_t": w_out.T,                               # (H, out_dim)
        "b_out": b_out.reshape(1, out_dim),               # (1, out_dim)
    }


def pack_params(params):
    """Fold the sigma(x)=0.5*tanh(x/2)+0.5 pre-scale into the weights and pack everything into
    one bf16 weight slab + one f32 bias/constant slab (done ONCE, not per call)."""
    F = params["w_ih_t"].shape[0]
    H = params["w_hh_t"].shape[0]
    out_dim = params["w_out_t"].shape[1]
    G = 4 * H

    # 0.5 for i/f/o gate columns (sigmoid via tanh), 1.0 for g columns (plain tanh).
    col_scale = jnp.concatenate([jnp.full((2 * H,), 0.5, jnp.float32),
                                 jnp.ones((H,), jnp.float32),
                                 jnp.full((H,), 0.5, jnp.float32)])

    w_ih_s = params["w_ih_t"] * col_scale[None, :]
    w_hh_s = params["w_hh_t"] * col_scale[None, :]
    w_out_pad = jnp.zeros((H, G), jnp.float32).at[:, :out_dim].set(0.5 * params["w_out_t"])
    w_slab = jnp.concatenate([w_ih_s, w_hh_s, w_out_pad], axis=0).astype(jnp.bfloat16)  # (F+2H, 4H)

    b_s = params["b"] * col_scale[None, :]
    b_out_pad = jnp.zeros((1, G), jnp.float32).at[:, :out_dim].set(0.5 * params["b_out"])
    post_scale = col_scale.reshape(1, G)
    post_bias = jnp.concatenate([jnp.full((1, 2 * H), 0.5, jnp.float32),
                                 jnp.zeros((1, H), jnp.float32),
                                 jnp.full((1, H), 0.5, jnp.float32)], axis=1)
    pad = jnp.zeros((4, G), jnp.float32)
    bias_slab = jnp.concatenate([b_s, b_out_pad, post_scale, post_bias, pad], axis=0)   # (8, 4H)

    return {"w_slab": w_slab, "bias_slab": bias_slab, "feat": F, "hidden": H, "out_dim": out_dim}


def network_lstm_forward(x, packed):
    B, T, F = x.shape
    H, out_dim = packed["hidden"], packed["out_dim"]
    assert packed["feat"] == F

    # Pad batch to a full sublane group so every per-step slice is a whole (8,128) tile.
    B_pad = ((B + 7) // 8) * 8
    x_pad = jnp.zeros((B_pad, T, F), jnp.float32).at[:B].set(x)
    # Time-major flatten so the hoisted projection is one row-major 2-D matmul and per-step
    # slices inside the kernel are static; bf16 for a single-pass MXU.
    x_flat = jnp.transpose(x_pad, (1, 0, 2)).reshape(T * B_pad, F).astype(jnp.bfloat16)

    G = 4 * H
    cost = pl.CostEstimate(
        flops=2 * (T * B_pad * F * G + (T - 1) * B_pad * H * G + B_pad * H * G),
        transcendentals=T * (B_pad * G + B_pad * H) + B_pad * out_dim,
        bytes_accessed=(x_flat.size * 2 + packed["w_slab"].size * 2
                        + packed["bias_slab"].size * 4 + B_pad * out_dim * 4),
    )

    vmem = pl.BlockSpec(memory_space=pltpu.MemorySpace.VMEM)
    kernel = functools.partial(lstm_head_kernel, batch=B_pad, seq_len=T,
                               hidden=H, feat=F, out_dim=out_dim)
    out = pl.pallas_call(
        kernel,
        out_shape=jax.ShapeDtypeStruct((B_pad, out_dim), jnp.float32),
        in_specs=[vmem, vmem, vmem],
        out_specs=vmem,
        cost_estimate=cost,
    )(x_flat, packed["w_slab"], packed["bias_slab"])
    return out[:B]


def reference_forward(x, params):
    """Pure-JAX f32 reference of the PyTorch forward, for a sanity check."""
    B, T, F = x.shape
    H = params["w_hh_t"].shape[0]

    def step(carry, x_t):
        h, c = carry
        gates = x_t @ params["w_ih_t"] + h @ params["w_hh_t"] + params["b"]
        i = jax.nn.sigmoid(gates[:, 0 * H:1 * H])
        f = jax.nn.sigmoid(gates[:, 1 * H:2 * H])
        g = jnp.tanh(gates[:, 2 * H:3 * H])
        o = jax.nn.sigmoid(gates[:, 3 * H:4 * H])
        c_new = f * c + i * g
        h_new = o * jnp.tanh(c_new)
        return (h_new, c_new), None

    h0 = jnp.zeros((B, H), jnp.float32)
    c0 = jnp.zeros((B, H), jnp.float32)
    (h_last, _), _ = lax.scan(step, (h0, c0), jnp.swapaxes(x, 0, 1))
    return jax.nn.sigmoid(h_last @ params["w_out_t"] + params["b_out"])


if __name__ == "__main__":
    B, T, F, H, OUT = 2, 8, 16, 32, 4

    key = jax.random.PRNGKey(0)
    kx, kp = jax.random.split(key)
    x = jax.random.normal(kx, (B, T, F), jnp.float32)
    params = init_params(kp, F, H, OUT)
    packed = pack_params(params)

    out = jax.block_until_ready(network_lstm_forward(x, packed))
    ref = jax.block_until_ready(reference_forward(x, params))

    assert out.shape == (B, OUT)
    # bf16 MXU operands (x, W_ih, W_hh, W_out) with f32 accumulation -> relaxed tolerance.
    assert jnp.allclose(out, ref, atol=2e-2, rtol=2e-2), (out, ref)
    print("KERNEL_OK")
</pallas_src>

<mosaic_0001>
module attributes {stable_mosaic.version = 11 : i64} {
  func.func @lstm_head_kernel(%arg0: memref<64x16xbf16, #tpu.memory_space<vmem>>, %arg1: memref<80x128xbf16, #tpu.memory_space<vmem>>, %arg2: memref<8x128xf32, #tpu.memory_space<vmem>>, %arg3: memref<8x4xf32, #tpu.memory_space<vmem>>) attributes {dimension_semantics = [], scalar_prefetch = 0 : i64, scratch_operands = 0 : i64, tpu.core_type = #tpu.core_type<tc>} {
    %c0 = arith.constant 0 : index
    %c0_0 = arith.constant 0 : index
    %0 = vector.load %arg1[%c0, %c0_0] : memref<80x128xbf16, #tpu.memory_space<vmem>>, vector<16x128xbf16>
    %c16 = arith.constant 16 : index
    %c0_1 = arith.constant 0 : index
    %1 = vector.load %arg1[%c16, %c0_1] : memref<80x128xbf16, #tpu.memory_space<vmem>>, vector<32x128xbf16>
    %c48 = arith.constant 48 : index
    %c0_2 = arith.constant 0 : index
    %2 = vector.load %arg1[%c48, %c0_2] : memref<80x128xbf16, #tpu.memory_space<vmem>>, vector<32x128xbf16>
    %c0_3 = arith.constant 0 : index
    %c0_4 = arith.constant 0 : index
    %3 = vector.load %arg2[%c0_3, %c0_4] : memref<8x128xf32, #tpu.memory_space<vmem>>, vector<1x128xf32>
    %c2 = arith.constant 2 : index
    %c0_5 = arith.constant 0 : index
    %4 = vector.load %arg2[%c2, %c0_5] : memref<8x128xf32, #tpu.memory_space<vmem>>, vector<1x128xf32>
    %c3 = arith.constant 3 : index
    %c0_6 = arith.constant 0 : index
    %5 = vector.load %arg2[%c3, %c0_6] : memref<8x128xf32, #tpu.memory_space<vmem>>, vector<1x128xf32>
    %c0_7 = arith.constant 0 : index
    %c0_8 = arith.constant 0 : index
    %6 = vector.load %arg0[%c0_7, %c0_8] : memref<64x16xbf16, #tpu.memory_space<vmem>>, vector<64x16xbf16>
    %cst = arith.constant dense<0.000000e+00> : vector<64x128xf32>
    %7 = tpu.matmul %6, %0, %cst {dimension_numbers = #tpu.dot_dimension_numbers<[1], [0], [0], [1], [0, 0, 1, 1], [], []>} : vector<64x16xbf16>, vector<16x128xbf16>, vector<64x128xf32> -> vector<64x128xf32>
    %8 = vector.broadcast %3 : vector<1x128xf32> to vector<64x128xf32>
    %9 = arith.addf %7, %8 : vector<64x128xf32>
    %cst_9 = arith.constant 0.000000e+00 : f32
    %10 = vector.broadcast %cst_9 : f32 to vector<8x32xf32>
    %11 = vector.extract_strided_slice %9 {offsets = [0, 0], sizes = [8, 128], strides = [1, 1]} : vector<64x128xf32> to vector<8x128xf32>
    %12 = math.tanh %11 : vector<8x128xf32>
    %13 = vector.broadcast %4 : vector<1x128xf32> to vector<8x128xf32>
    %14 = arith.mulf %12, %13 : vector<8x128xf32>
    %15 = vector.broadcast %5 : vector<1x128xf32> to vector<8x128xf32>
    %16 = arith.addf %14, %15 : vector<8x128xf32>
    %17 = vector.extract_strided_slice %16 {offsets = [0, 0], sizes = [8, 32], strides = [1, 1]} : vector<8x128xf32> to vector<8x32xf32>
    %18 = vector.extract_strided_slice %16 {offsets = [0, 32], sizes = [8, 32], strides = [1, 1]} : vector<8x128xf32> to vector<8x32xf32>
    %19 = vector.extract_strided_slice %16 {offsets = [0, 64], sizes = [8, 32], strides = [1, 1]} : vector<8x128xf32> to vector<8x32xf32>
    %20 = vector.extract_strided_slice %16 {offsets = [0, 96], sizes = [8, 32], strides = [1, 1]} : vector<8x128xf32> to vector<8x32xf32>
    %21 = arith.mulf %18, %10 : vector<8x32xf32>
    %22 = arith.mulf %17, %19 : vector<8x32xf32>
    %23 = arith.addf %21, %22 : vector<8x32xf32>
    %24 = math.tanh %23 : vector<8x32xf32>
    %25 = arith.mulf %20, %24 : vector<8x32xf32>
    %26 = arith.truncf %25 : vector<8x32xf32> to vector<8x32xbf16>
    %27 = vector.extract_strided_slice %9 {offsets = [8, 0], sizes = [8, 128], strides = [1, 1]} : vector<64x128xf32> to vector<8x128xf32>
    %cst_10 = arith.constant dense<0.000000e+00> : vector<8x128xf32>
    %28 = tpu.matmul %26, %1, %cst_10 {dimension_numbers = #tpu.dot_dimension_numbers<[1], [0], [0], [1], [0, 0, 1, 1], [], []>} : vector<8x32xbf16>, vector<32x128xbf16>, vector<8x128xf32> -> vector<8x128xf32>
    %29 = arith.addf %27, %28 : vector<8x128xf32>
    %30 = math.tanh %29 : vector<8x128xf32>
    %31 = vector.broadcast %4 : vector<1x128xf32> to vector<8x128xf32>
    %32 = arith.mulf %30, %31 : vector<8x128xf32>
    %33 = vector.broadcast %5 : vector<1x128xf32> to vector<8x128xf32>
    %34 = arith.addf %32, %33 : vector<8x128xf32>
    %35 = vector.extract_strided_slice %34 {offsets = [0, 0], sizes = [8, 32], strides = [1, 1]} : vector<8x128xf32> to vector<8x32xf32>
    %36 = vector.extract_strided_slice %34 {offsets = [0, 32], sizes = [8, 32], strides = [1, 1]} : vector<8x128xf32> to vector<8x32xf32>
    %37 = vector.extract_strided_slice %34 {offsets = [0, 64], sizes = [8, 32], strides = [1, 1]} : vector<8x128xf32> to vector<8x32xf32>
    %38 = vector.extract_strided_slice %34 {offsets = [0, 96], sizes = [8, 32], strides = [1, 1]} : vector<8x128xf32> to vector<8x32xf32>
    %39 = arith.mulf %36, %23 : vector<8x32xf32>
    %40 = arith.mulf %35, %37 : vector<8x32xf32>
    %41 = arith.addf %39, %40 : vector<8x32xf32>
    %42 = math.tanh %41 : vector<8x32xf32>
    %43 = arith.mulf %38, %42 : vector<8x32xf32>
    %44 = arith.truncf %43 : vector<8x32xf32> to vector<8x32xbf16>
    %45 = vector.extract_strided_slice %9 {offsets = [16, 0], sizes = [8, 128], strides = [1, 1]} : vector<64x128xf32> to vector<8x128xf32>
    %cst_11 = arith.constant dense<0.000000e+00> : vector<8x128xf32>
    %46 = tpu.matmul %44, %1, %cst_11 {dimension_numbers = #tpu.dot_dimension_numbers<[1], [0], [0], [1], [0, 0, 1, 1], [], []>} : vector<8x32xbf16>, vector<32x128xbf16>, vector<8x128xf32> -> vector<8x128xf32>
    %47 = arith.addf %45, %46 : vector<8x128xf32>
    %48 = math.tanh %47 : vector<8x128xf32>
    %49 = vector.broadcast %4 : vector<1x128xf32> to vector<8x128xf32>
    %50 = arith.mulf %48, %49 : vector<8x128xf32>
    %51 = vector.broadcast %5 : vector<1x128xf32> to vector<8x128xf32>
    %52 = arith.addf %50, %51 : vector<8x128xf32>
    %53 = vector.extract_strided_slice %52 {offsets = [0, 0], sizes = [8, 32], strides = [1, 1]} : vector<8x128xf32> to vector<8x32xf32>
    %54 = vector.extract_strided_slice %52 {offsets = [0, 32], sizes = [8, 32], strides = [1, 1]} : vector<8x128xf32> to vector<8x32xf32>
    %55 = vector.extract_strided_slice %52 {offsets = [0, 64], sizes = [8, 32], strides = [1, 1]} : vector<8x128xf32> to vector<8x32xf32>
    %56 = vector.extract_strided_slice %52 {offsets = [0, 96], sizes = [8, 32], strides = [1, 1]} : vector<8x128xf32> to vector<8x32xf32>
    %57 = arith.mulf %54, %41 : vector<8x32xf32>
    %58 = arith.mulf %53, %55 : vector<8x32xf32>
    %59 = arith.addf %57, %58 : vector<8x32xf32>
    %60 = math.tanh %59 : vector<8x32xf32>
    %61 = arith.mulf %56, %60 : vector<8x32xf32>
    %62 = arith.truncf %61 : vector<8x32xf32> to vector<8x32xbf16>
    %63 = vector.extract_strided_slice %9 {offsets = [24, 0], sizes = [8, 128], strides = [1, 1]} : vector<64x128xf32> to vector<8x128xf32>
    %cst_12 = arith.constant dense<0.000000e+00> : vector<8x128xf32>
    %64 = tpu.matmul %62, %1, %cst_12 {dimension_numbers = #tpu.dot_dimension_numbers<[1], [0], [0], [1], [0, 0, 1, 1], [], []>} : vector<8x32xbf16>, vector<32x128xbf16>, vector<8x128xf32> -> vector<8x128xf32>
    %65 = arith.addf %63, %64 : vector<8x128xf32>
    %66 = math.tanh %65 : vector<8x128xf32>
    %67 = vector.broadcast %4 : vector<1x128xf32> to vector<8x128xf32>
    %68 = arith.mulf %66, %67 : vector<8x128xf32>
    %69 = vector.broadcast %5 : vector<1x128xf32> to vector<8x128xf32>
    %70 = arith.addf %68, %69 : vector<8x128xf32>
    %71 = vector.extract_strided_slice %70 {offsets = [0, 0], sizes = [8, 32], strides = [1, 1]} : vector<8x128xf32> to vector<8x32xf32>
    %72 = vector.extract_strided_slice %70 {offsets = [0, 32], sizes = [8, 32], strides = [1, 1]} : vector<8x128xf32> to vector<8x32xf32>
    %73 = vector.extract_strided_slice %70 {offsets = [0, 64], sizes = [8, 32], strides = [1, 1]} : vector<8x128xf32> to vector<8x32xf32>
    %74 = vector.extract_strided_slice %70 {offsets = [0, 96], sizes = [8, 32], strides = [1, 1]} : vector<8x128xf32> to vector<8x32xf32>
    %75 = arith.mulf %72, %59 : vector<8x32xf32>
    %76 = arith.mulf %71, %73 : vector<8x32xf32>
    %77 = arith.addf %75, %76 : vector<8x32xf32>
    %78 = math.tanh %77 : vector<8x32xf32>
    %79 = arith.mulf %74, %78 : vector<8x32xf32>
    %80 = arith.truncf %79 : vector<8x32xf32> to vector<8x32xbf16>
    %81 = vector.extract_strided_slice %9 {offsets = [32, 0], sizes = [8, 128], strides = [1, 1]} : vector<64x128xf32> to vector<8x128xf32>
    %cst_13 = arith.constant dense<0.000000e+00> : vector<8x128xf32>
    %82 = tpu.matmul %80, %1, %cst_13 {dimension_numbers = #tpu.dot_dimension_numbers<[1], [0], [0], [1], [0, 0, 1, 1], [], []>} : vector<8x32xbf16>, vector<32x128xbf16>, vector<8x128xf32> -> vector<8x128xf32>
    %83 = arith.addf %81, %82 : vector<8x128xf32>
    %84 = math.tanh %83 : vector<8x128xf32>
    %85 = vector.broadcast %4 : vector<1x128xf32> to vector<8x128xf32>
    %86 = arith.mulf %84, %85 : vector<8x128xf32>
    %87 = vector.broadcast %5 : vector<1x128xf32> to vector<8x128xf32>
    %88 = arith.addf %86, %87 : vector<8x128xf32>
    %89 = vector.extract_strided_slice %88 {offsets = [0, 0], sizes = [8, 32], strides = [1, 1]} : vector<8x128xf32> to vector<8x32xf32>
    %90 = vector.extract_strided_slice %88 {offsets = [0, 32], sizes = [8, 32], strides = [1, 1]} : vector<8x128xf32> to vector<8x32xf32>
    %91 = vector.extract_strided_slice %88 {offsets = [0, 64], sizes = [8, 32], strides = [1, 1]} : vector<8x128xf32> to vector<8x32xf32>
    %92 = vector.extract_strided_slice %88 {offsets = [0, 96], sizes = [8, 32], strides = [1, 1]} : vector<8x128xf32> to vector<8x32xf32>
    %93 = arith.mulf %90, %77 : vector<8x32xf32>
    %94 = arith.mulf %89, %91 : vector<8x32xf32>
    %95 = arith.addf %93, %94 : vector<8x32xf32>
    %96 = math.tanh %95 : vector<8x32xf32>
    %97 = arith.mulf %92, %96 : vector<8x32xf32>
    %98 = arith.truncf %97 : vector<8x32xf32> to vector<8x32xbf16>
    %99 = vector.extract_strided_slice %9 {offsets = [40, 0], sizes = [8, 128], strides = [1, 1]} : vector<64x128xf32> to vector<8x128xf32>
    %cst_14 = arith.constant dense<0.000000e+00> : vector<8x128xf32>
    %100 = tpu.matmul %98, %1, %cst_14 {dimension_numbers = #tpu.dot_dimension_numbers<[1], [0], [0], [1], [0, 0, 1, 1], [], []>} : vector<8x32xbf16>, vector<32x128xbf16>, vector<8x128xf32> -> vector<8x128xf32>
    %101 = arith.addf %99, %100 : vector<8x128xf32>
    %102 = math.tanh %101 : vector<8x128xf32>
    %103 = vector.broadcast %4 : vector<1x128xf32> to vector<8x128xf32>
    %104 = arith.mulf %102, %103 : vector<8x128xf32>
    %105 = vector.broadcast %5 : vector<1x128xf32> to vector<8x128xf32>
    %106 = arith.addf %104, %105 : vector<8x128xf32>
    %107 = vector.extract_strided_slice %106 {offsets = [0, 0], sizes = [8, 32], strides = [1, 1]} : vector<8x128xf32> to vector<8x32xf32>
    %108 = vector.extract_strided_slice %106 {offsets = [0, 32], sizes = [8, 32], strides = [1, 1]} : vector<8x128xf32> to vector<8x32xf32>
    %109 = vector.extract_strided_slice %106 {offsets = [0, 64], sizes = [8, 32], strides = [1, 1]} : vector<8x128xf32> to vector<8x32xf32>
    %110 = vector.extract_strided_slice %106 {offsets = [0, 96], sizes = [8, 32], strides = [1, 1]} : vector<8x128xf32> to vector<8x32xf32>
    %111 = arith.mulf %108, %95 : vector<8x32xf32>
    %112 = arith.mulf %107, %109 : vector<8x32xf32>
    %113 = arith.addf %111, %112 : vector<8x32xf32>
    %114 = math.tanh %113 : vector<8x32xf32>
    %115 = arith.mulf %110, %114 : vector<8x32xf32>
    %116 = arith.truncf %115 : vector<8x32xf32> to vector<8x32xbf16>
    %117 = vector.extract_strided_slice %9 {offsets = [48, 0], sizes = [8, 128], strides = [1, 1]} : vector<64x128xf32> to vector<8x128xf32>
    %cst_15 = arith.constant dense<0.000000e+00> : vector<8x128xf32>
    %118 = tpu.matmul %116, %1, %cst_15 {dimension_numbers = #tpu.dot_dimension_numbers<[1], [0], [0], [1], [0, 0, 1, 1], [], []>} : vector<8x32xbf16>, vector<32x128xbf16>, vector<8x128xf32> -> vector<8x128xf32>
    %119 = arith.addf %117, %118 : vector<8x128xf32>
    %120 = math.tanh %119 : vector<8x128xf32>
    %121 = vector.broadcast %4 : vector<1x128xf32> to vector<8x128xf32>
    %122 = arith.mulf %120, %121 : vector<8x128xf32>
    %123 = vector.broadcast %5 : vector<1x128xf32> to vector<8x128xf32>
    %124 = arith.addf %122, %123 : vector<8x128xf32>
    %125 = vector.extract_strided_slice %124 {offsets = [0, 0], sizes = [8, 32], strides = [1, 1]} : vector<8x128xf32> to vector<8x32xf32>
    %126 = vector.extract_strided_slice %124 {offsets = [0, 32], sizes = [8, 32], strides = [1, 1]} : vector<8x128xf32> to vector<8x32xf32>
    %127 = vector.extract_strided_slice %124 {offsets = [0, 64], sizes = [8, 32], strides = [1, 1]} : vector<8x128xf32> to vector<8x32xf32>
    %128 = vector.extract_strided_slice %124 {offsets = [0, 96], sizes = [8, 32], strides = [1, 1]} : vector<8x128xf32> to vector<8x32xf32>
    %129 = arith.mulf %126, %113 : vector<8x32xf32>
    %130 = arith.mulf %125, %127 : vector<8x32xf32>
    %131 = arith.addf %129, %130 : vector<8x32xf32>
    %132 = math.tanh %131 : vector<8x32xf32>
    %133 = arith.mulf %128, %132 : vector<8x32xf32>
    %134 = arith.truncf %133 : vector<8x32xf32> to vector<8x32xbf16>
    %135 = vector.extract_strided_slice %9 {offsets = [56, 0], sizes = [8, 128], strides = [1, 1]} : vector<64x128xf32> to vector<8x128xf32>
    %cst_16 = arith.constant dense<0.000000e+00> : vector<8x128xf32>
    %136 = tpu.matmul %134, %1, %cst_16 {dimension_numbers = #tpu.dot_dimension_numbers<[1], [0], [0], [1], [0, 0, 1, 1], [], []>} : vector<8x32xbf16>, vector<32x128xbf16>, vector<8x128xf32> -> vector<8x128xf32>
    %137 = arith.addf %135, %136 : vector<8x128xf32>
    %138 = math.tanh %137 : vector<8x128xf32>
    %139 = vector.broadcast %4 : vector<1x128xf32> to vector<8x128xf32>
    %140 = arith.mulf %138, %139 : vector<8x128xf32>
    %141 = vector.broadcast %5 : vector<1x128xf32> to vector<8x128xf32>
    %142 = arith.addf %140, %141 : vector<8x128xf32>
    %143 = vector.extract_strided_slice %142 {offsets = [0, 0], sizes = [8, 32], strides = [1, 1]} : vector<8x128xf32> to vector<8x32xf32>
    %144 = vector.extract_strided_slice %142 {offsets = [0, 32], sizes = [8, 32], strides = [1, 1]} : vector<8x128xf32> to vector<8x32xf32>
    %145 = vector.extract_strided_slice %142 {offsets = [0, 64], sizes = [8, 32], strides = [1, 1]} : vector<8x128xf32> to vector<8x32xf32>
    %146 = vector.extract_strided_slice %142 {offsets = [0, 96], sizes = [8, 32], strides = [1, 1]} : vector<8x128xf32> to vector<8x32xf32>
    %147 = arith.mulf %144, %131 : vector<8x32xf32>
    %148 = arith.mulf %143, %145 : vector<8x32xf32>
    %149 = arith.addf %147, %148 : vector<8x32xf32>
    %150 = math.tanh %149 : vector<8x32xf32>
    %151 = arith.mulf %146, %150 : vector<8x32xf32>
    %152 = arith.truncf %151 : vector<8x32xf32> to vector<8x32xbf16>
    %cst_17 = arith.constant dense<0.000000e+00> : vector<8x128xf32>
    %153 = tpu.matmul %152, %2, %cst_17 {dimension_numbers = #tpu.dot_dimension_numbers<[1], [0], [0], [1], [0, 0, 1, 1], [], []>} : vector<8x32xbf16>, vector<32x128xbf16>, vector<8x128xf32> -> vector<8x128xf32>
    %154 = vector.extract_strided_slice %153 {offsets = [0, 0], sizes = [8, 4], strides = [1, 1]} : vector<8x128xf32> to vector<8x4xf32>
    %c1 = arith.constant 1 : index
    %c0_18 = arith.constant 0 : index
    %155 = vector.load %arg2[%c1, %c0_18] : memref<8x128xf32, #tpu.memory_space<vmem>>, vector<1x4xf32>
    %156 = vector.broadcast %155 : vector<1x4xf32> to vector<8x4xf32>
    %157 = arith.addf %154, %156 : vector<8x4xf32>
    %158 = math.tanh %157 : vector<8x4xf32>
    %cst_19 = arith.constant 5.000000e-01 : f32
    %159 = vector.broadcast %cst_19 : f32 to vector<8x4xf32>
    %160 = arith.mulf %158, %159 : vector<8x4xf32>
    %cst_20 = arith.constant 5.000000e-01 : f32
    %161 = vector.broadcast %cst_20 : f32 to vector<8x4xf32>
    %162 = arith.addf %160, %161 : vector<8x4xf32>
    %c0_21 = arith.constant 0 : index
    %c0_22 = arith.constant 0 : index
    %163 = vector.load %arg3[%c0_21, %c0_22] : memref<8x4xf32, #tpu.memory_space<vmem>>, vector<8x4xf32>
    tpu.vector_store %arg3[%c0_21, %c0_22], %162 {strides = array<i32>} : memref<8x4xf32, #tpu.memory_space<vmem>>, vector<8x4xf32>,
    return
  }
}

</mosaic_0001>

<llo_original>
// kernel: tpu_custom_call.1
$region0: #{tpu_custom_call.1}
  #allocation0 [shape = 'u32[]', space=smem, size = 0x4, offset = 0x4, fixed_abs, tag = 'smem constant byte address 0x4 - core index']
  #allocation1 [shape = 'u32[144,128]{1,0:T(1,128)}', space=vmem, size = 0x12000, scoped, tag = 'internal scratch']
  %s0 = inlined_call_operand.vmem [shape: bf16[64,16], index: 0, kind: input, shape index: {}]
  %s1 = inlined_call_operand.vmem [shape: bf16[80,128], index: 1, kind: input, shape index: {}]
  %s2 = inlined_call_operand.hbm [shape: f32[8,128], index: 2, kind: input, shape index: {}]
  %s3 = inlined_call_operand.vmem [shape: f32[8,4], index: 3, kind: output, shape index: {}]
  %s4 = sld [smem:[#allocation0]]
  $region26: #{tpu_custom_call.1} parent=0
    _
  %s6 = ssub.s32 1, %s4
  %s7 = scalar_select 0, %s6, %s4
  $region1: #{tpu_custom_call.1} parent=0
    #allocation2 [shape = 'u8[4096]{0}', space=vmem, size = 0x1000, scoped, tag = 'input window, operand 2, single buffered']
    #allocation3 [shape = 's32[1]{0}', space=sflag, size = 0x4, scoped, tag = 'scoped memory for tpu_custom_call.1']
    %8 = vsyncpa [#allocation3], 0
    // Predicated region
    $region2: #{tpu_custom_call.1} parent=1 // pred_check
      _
    $region3: #{tpu_custom_call.1} parent=1 // pred_check_branch
      %10 = sbr.rel (0) target = $region5
    $region4: #{tpu_custom_call.1} parent=1 // pred_region
      _
    $region5: #{tpu_custom_call.1} parent=1 // pred_fallthru
      _
    // Predicated region
    $region6: #{tpu_custom_call.1} parent=1 // pred_check
      _
    $region7: #{tpu_custom_call.1} parent=1 // pred_check_branch
      %12 = sbr.rel (0) target = $region9
    $region8: #{tpu_custom_call.1} parent=1 // pred_region
      _
    $region9: #{tpu_custom_call.1} parent=1 // pred_fallthru
      _
    // Predicated region
    $region10: #{tpu_custom_call.1} parent=1 // pred_check
      _
    $region11: #{tpu_custom_call.1} parent=1 // pred_check_branch
      %14 = sbr.rel (0) target = $region13
    $region12: #{tpu_custom_call.1} parent=1 // pred_region
      %s16 = ssub.s32 128, 128
      %17 = vsyncadd [#allocation3], %s16
      %s19 = sshll.u32 [#allocation2], 4
      %s20 = int_to_ptr.vmem [resolvable:$true] %s19
      %22 = dma.hbm_to_vmem [thread:$0]  %s2, 128, %s20, [#allocation3]
    $region13: #{tpu_custom_call.1} parent=1 // pred_fallthru
      _
    // Predicated region
    $region14: #{tpu_custom_call.1} parent=1 // pred_check
      _
    $region15: #{tpu_custom_call.1} parent=1 // pred_check_branch
      %24 = sbr.rel (0) target = $region17
    $region16: #{tpu_custom_call.1} parent=1 // pred_region
      %25 = dma.done [#allocation3], 128
    $region17: #{tpu_custom_call.1} parent=1 // pred_fallthru
      _
    %v27 = vld [vmem:[%s1] sm:$0xf]
    %v28 = vld [vmem:[%s1 + $0x4] sm:$0xf]
    %v29 = vld [vmem:[%s1 + $0x8] sm:$0xf]
    %v30 = vld [vmem:[%s1 + $0xc] sm:$0xf]
    %v31 = vld [vmem:[%s1 + $0x10] sm:$0xf]
    %v32 = vld [vmem:[%s1 + $0x14] sm:$0xf]
    %v33 = vld [vmem:[%s1 + $0x18] sm:$0xf]
    %v34 = vld [vmem:[%s1 + $0x1c] sm:$0xf]
    %v35 = vld [vmem:[%s1 + $0x20] sm:$0xf]
    %v36 = vld [vmem:[%s1 + $0x24] sm:$0xf]
    %v37 = vld [vmem:[#allocation2] sm:$0x1]
    %v38 = vld [vmem:[#allocation2 + $0x2] sm:$0x1]
    %v39 = vld [vmem:[#allocation2 + $0x3] sm:$0x1]
    %v40 = vld [vmem:[%s0] sm:$0xf]
    %v41 = vld [vmem:[%s0 + $0x4] sm:$0xf]
    %v42 = vld [vmem:[%s0 + $0x8] sm:$0xf]
    %v43 = vld [vmem:[%s0 + $0xc] sm:$0xf]
    %v44 = vld [vmem:[%s0 + $0x10] sm:$0xf]
    %v45 = vld [vmem:[%s0 + $0x14] sm:$0xf]
    %v46 = vld [vmem:[%s0 + $0x18] sm:$0xf]
    %v47 = vld [vmem:[%s0 + $0x1c] sm:$0xf]
    %v48 = vlaneseq
    %v49 = vshrl.u32 %v48, 7
    %v50 = vsub.s32 0, %v49
    %v51 = vrot.slane %v37, %v50
    %v60 = vunpack.c.l.b16 %v40
    %v61 = vunpack.c.l.b16 %v41
    %v62 = vunpack.c.l.b16 %v42
    %v63 = vunpack.c.l.b16 %v43
    %v64 = vunpack.c.l.b16 %v44
    %v65 = vunpack.c.l.b16 %v45
    %v66 = vunpack.c.l.b16 %v46
    %v67 = vunpack.c.l.b16 %v47
    %v68 = vpack.c.b16 %v61, %v60
    %v69 = vpack.c.b16 %v63, %v62
    %v70 = vpack.c.b16 %v65, %v64
    %v71 = vpack.c.b16 %v67, %v66
    %v74 = vunpack.c.l.b16 %v27
    %v75 = vunpack.c.l.b16 %v28
    %v76 = vpack.c.b16 %v75, %v74
    %vm78 = vcmask 130048
    %v80 = vsel %vm78, %v68, 0
    %v83 = vsel %vm78, %v69, 0
    %v86 = vsel %vm78, %v70, 0
    %v89 = vsel %vm78, %v71, 0
    %91 = vmatprep.subr.bf16.mxu0 0
    %92 = vmatpush1.bf16.msra.mxu0 0
    %93 = vmatprep.subr.bf16.mxu0 0
    %94 = vmatpush1.bf16.msra.mxu0 0
    %95 = vmatprep.subr.bf16.mxu0 0
    %96 = vmatpush1.bf16.msra.mxu0 0
    %97 = vmatprep.subr.bf16.mxu0 0
    %98 = vmatpush1.bf16.msra.mxu0 0
    %99 = vmatprep.subr.bf16.mxu0 0
    %100 = vmatpush1.bf16.msra.mxu0 0
    %101 = vmatprep.subr.bf16.mxu0 0
    %102 = vmatpush1.bf16.msra.mxu0 0
    %103 = vmatprep.subr.bf16.mxu0 0
    %104 = vmatpush1.bf16.msra.mxu0 0
    %105 = vmatprep.subr.bf16.mxu0 0
    %106 = vmatpush1.bf16.msra.mxu0 %v76
    %107 = vmatprep.subr.bf16.mxu0 0
    %108 = vmatpush2.bf16.msra.mxu0 0
    %109 = vmatprep.subr.bf16.mxu0 0
    %110 = vmatpush2.bf16.msra.mxu0 0
    %111 = vmatprep.subr.bf16.mxu0 0
    %112 = vmatpush2.bf16.msra.mxu0 0
    %113 = vmatprep.subr.bf16.mxu0 0
    %114 = vmatpush2.bf16.msra.mxu0 0
    %115 = vmatprep.subr.bf16.mxu0 0
    %116 = vmatpush2.bf16.msra.mxu0 0
    %117 = vmatprep.subr.bf16.mxu0 0
    %118 = vmatpush2.bf16.msra.mxu0 0
    %119 = vmatprep.subr.bf16.mxu0 0
    %120 = vmatpush2.bf16.msra.mxu0 0
    %121 = vmatprep.subr.bf16.mxu0 0
    %122 = vmatpush2.bf16.msra.mxu0 0
    %123 = vmatprep.mubr.bf16.mxu0 0
    %124 = vmatmul.mubr.bf16.gmra.mxu0 %v80
    %v125 = vpop.f32.mrf.mxu0
    %v126 = vadd.f32 %v51, %v125
    %v127 = vpop.f32.mrf.mxu0
    %v128 = vpop.f32.mrf.mxu0
    %v129 = vadd.f32 %v51, %v128
    %v130 = vpop.f32.mrf.mxu0
    %131 = vmatprep.mubr.bf16.mxu0 0
    %132 = vmatmul.mubr.bf16.gmra.mxu0 %v83
    %v133 = vpop.f32.mrf.mxu0
    %v134 = vadd.f32 %v51, %v133
    %v135 = vpop.f32.mrf.mxu0
    %v136 = vpop.f32.mrf.mxu0
    %v137 = vadd.f32 %v51, %v136
    %v138 = vpop.f32.mrf.mxu0
    %139 = vmatprep.mubr.bf16.mxu0 0
    %140 = vmatmul.mubr.bf16.gmra.mxu0 %v86
    %v141 = vpop.f32.mrf.mxu0
    %v142 = vadd.f32 %v51, %v141
    %v143 = vpop.f32.mrf.mxu0
    %v144 = vpop.f32.mrf.mxu0
    %v145 = vadd.f32 %v51, %v144
    %v146 = vpop.f32.mrf.mxu0
    %147 = vmatprep.mubr.bf16.mxu0 0
    %148 = vmatmul.mubr.bf16.gmra.mxu0 %v89
    %v149 = vpop.f32.mrf.mxu0
    %v150 = vadd.f32 %v51, %v149
    %v151 = vpop.f32.mrf.mxu0
    %v152 = vpop.f32.mrf.mxu0
    %v153 = vadd.f32 %v51, %v152
    %v154 = vpop.f32.mrf.mxu0
    %155 = vdwg.mxu0
    %v156 = vtanh.pop %v126
    %v157 = vlaneseq
    %v158 = vshrl.u32 %v157, 7
    %v159 = vsub.s32 0, %v158
    %v160 = vrot.slane %v38, %v159
    %v161 = vmul.f32 %v156, %v160
    %v162 = vlaneseq
    %v163 = vshrl.u32 %v162, 7
    %v164 = vsub.s32 0, %v163
    %v165 = vrot.slane %v39, %v164
    %v166 = vadd.f32 %v161, %v165
    %v167 = vmul.f32 %v166, 0.0
    %169 = vrot.lane.b32.xlu0 %v166, 64
    %v170 = vpop.permute.xlu0 %169
    %v172 = vmul.f32 %v166, %v170
    %174 = vrot.lane.b32.xlu0 %v172, 32
    %v175 = vpop.permute.xlu0 %174
    %v177 = vadd.f32 %v167, %v175
    %v178 = vtanh.pop %v177
    %180 = vrot.lane.b32.xlu0 %v178, 64
    %v181 = vpop.permute.xlu0 %180
    %v183 = vmul.f32 %v166, %v181
    %v184 = vpack.c.bf16 %v183, %v183
    %186 = vrot.lane.b32.xlu0 %v184, 32
    %v187 = vpop.permute.xlu0 %186
    %v192 = vunpack.c.l.b16 %v29
    %v193 = vunpack.c.l.b16 %v30
    %v194 = vunpack.c.l.b16 %v31
    %v195 = vunpack.c.l.b16 %v32
    %v196 = vpack.c.b16 %v193, %v192
    %v197 = vpack.c.b16 %v195, %v194
    %vm200 = vcmask 261120
    %v202 = vsel %vm200, %v187, 0
    %204 = vmatprep.subr.bf16.mxu0 0
    %205 = vmatpush1.bf16.msra.mxu0 0
    %206 = vmatprep.subr.bf16.mxu0 0
    %207 = vmatpush1.bf16.msra.mxu0 0
    %208 = vmatprep.subr.bf16.mxu0 0
    %209 = vmatpush1.bf16.msra.mxu0 0
    %210 = vmatprep.subr.bf16.mxu0 0
    %211 = vmatpush1.bf16.msra.mxu0 0
    %212 = vmatprep.subr.bf16.mxu0 0
    %213 = vmatpush1.bf16.msra.mxu0 0
    %214 = vmatprep.subr.bf16.mxu0 0
    %215 = vmatpush1.bf16.msra.mxu0 0
    %216 = vmatprep.subr.bf16.mxu0 0
    %217 = vmatpush1.bf16.msra.mxu0 %v197
    %218 = vmatprep.subr.bf16.mxu0 0
    %219 = vmatpush1.bf16.msra.mxu0 %v196
    %220 = vmatprep.subr.bf16.mxu0 0
    %221 = vmatpush2.bf16.msra.mxu0 0
    %222 = vmatprep.subr.bf16.mxu0 0
    %223 = vmatpush2.bf16.msra.mxu0 0
    %224 = vmatprep.subr.bf16.mxu0 0
    %225 = vmatpush2.bf16.msra.mxu0 0
    %226 = vmatprep.subr.bf16.mxu0 0
    %227 = vmatpush2.bf16.msra.mxu0 0
    %228 = vmatprep.subr.bf16.mxu0 0
    %229 = vmatpush2.bf16.msra.mxu0 0
    %230 = vmatprep.subr.bf16.mxu0 0
    %231 = vmatpush2.bf16.msra.mxu0 0
    %232 = vmatprep.subr.bf16.mxu0 0
    %233 = vmatpush2.bf16.msra.mxu0 0
    %234 = vmatprep.subr.bf16.mxu0 0
    %235 = vmatpush2.bf16.msra.mxu0 0
    %236 = vmatprep.mubr.bf16.mxu0 0
    %237 = vmatmul.mubr.bf16.gmra.mxu0 %v202
    %v238 = vpop.f32.mrf.mxu0
    %v239 = vadd.f32 0.0, %v238
    %v240 = vpop.f32.mrf.mxu0
    %v241 = vpop.f32.mrf.mxu0
    %v242 = vpop.f32.mrf.mxu0
    %243 = vdwg.mxu0
    %v244 = vadd.f32 %v129, %v239
    %v245 = vtanh.pop %v244
    %v246 = vmul.f32 %v245, %v160
    %v247 = vadd.f32 %v246, %v165
    %v248 = vmul.f32 %v247, %v177
    %250 = vrot.lane.b32.xlu0 %v247, 64
    %v251 = vpop.permute.xlu0 %250
    %v253 = vmul.f32 %v247, %v251
    %255 = vrot.lane.b32.xlu0 %v253, 32
    %v256 = vpop.permute.xlu0 %255
    %v258 = vadd.f32 %v248, %v256
    %v259 = vtanh.pop %v258
    %261 = vrot.lane.b32.xlu0 %v259, 64
    %v262 = vpop.permute.xlu0 %261
    %v264 = vmul.f32 %v247, %v262
    %v265 = vpack.c.bf16 %v264, %v264
    %267 = vrot.lane.b32.xlu0 %v265, 32
    %v268 = vpop.permute.xlu0 %267
    %v270 = vsel %vm200, %v268, 0
    %272 = vmatprep.subr.bf16.mxu0 0
    %273 = vmatpush1.bf16.msra.mxu0 0
    %274 = vmatprep.subr.bf16.mxu0 0
    %275 = vmatpush1.bf16.msra.mxu0 0
    %276 = vmatprep.subr.bf16.mxu0 0
    %277 = vmatpush1.bf16.msra.mxu0 0
    %278 = vmatprep.subr.bf16.mxu0 0
    %279 = vmatpush1.bf16.msra.mxu0 0
    %280 = vmatprep.subr.bf16.mxu0 0
    %281 = vmatpush1.bf16.msra.mxu0 0
    %282 = vmatprep.subr.bf16.mxu0 0
    %283 = vmatpush1.bf16.msra.mxu0 0
    %284 = vmatprep.subr.bf16.mxu0 0
    %285 = vmatpush1.bf16.msra.mxu0 %v197
    %286 = vmatprep.subr.bf16.mxu0 0
    %287 = vmatpush1.bf16.msra.mxu0 %v196
    %288 = vmatprep.subr.bf16.mxu0 0
    %289 = vmatpush2.bf16.msra.mxu0 0
    %290 = vmatprep.subr.bf16.mxu0 0
    %291 = vmatpush2.bf16.msra.mxu0 0
    %292 = vmatprep.subr.bf16.mxu0 0
    %293 = vmatpush2.bf16.msra.mxu0 0
    %294 = vmatprep.subr.bf16.mxu0 0
    %295 = vmatpush2.bf16.msra.mxu0 0
    %296 = vmatprep.subr.bf16.mxu0 0
    %297 = vmatpush2.bf16.msra.mxu0 0
    %298 = vmatprep.subr.bf16.mxu0 0
    %299 = vmatpush2.bf16.msra.mxu0 0
    %300 = vmatprep.subr.bf16.mxu0 0
    %301 = vmatpush2.bf16.msra.mxu0 0
    %302 = vmatprep.subr.bf16.mxu0 0
    %303 = vmatpush2.bf16.msra.mxu0 0
    %304 = vmatprep.mubr.bf16.mxu0 0
    %305 = vmatmul.mubr.bf16.gmra.mxu0 %v270
    %v306 = vpop.f32.mrf.mxu0
    %v307 = vadd.f32 0.0, %v306
    %v308 = vpop.f32.mrf.mxu0
    %v309 = vpop.f32.mrf.mxu0
    %v310 = vpop.f32.mrf.mxu0
    %311 = vdwg.mxu0
    %v312 = vadd.f32 %v134, %v307
    %v313 = vtanh.pop %v312
    %v314 = vmul.f32 %v313, %v160
    %v315 = vadd.f32 %v314, %v165
    %v316 = vmul.f32 %v315, %v258
    %318 = vrot.lane.b32.xlu0 %v315, 64
    %v319 = vpop.permute.xlu0 %318
    %v321 = vmul.f32 %v315, %v319
    %323 = vrot.lane.b32.xlu0 %v321, 32
    %v324 = vpop.permute.xlu0 %323
    %v326 = vadd.f32 %v316, %v324
    %v327 = vtanh.pop %v326
    %329 = vrot.lane.b32.xlu0 %v327, 64
    %v330 = vpop.permute.xlu0 %329
    %v332 = vmul.f32 %v315, %v330
    %v333 = vpack.c.bf16 %v332, %v332
    %335 = vrot.lane.b32.xlu0 %v333, 32
    %v336 = vpop.permute.xlu0 %335
    %v338 = vsel %vm200, %v336, 0
    %340 = vmatprep.subr.bf16.mxu0 0
    %341 = vmatpush1.bf16.msra.mxu0 0
    %342 = vmatprep.subr.bf16.mxu0 0
    %343 = vmatpush1.bf16.msra.mxu0 0
    %344 = vmatprep.subr.bf16.mxu0 0
    %345 = vmatpush1.bf16.msra.mxu0 0
    %346 = vmatprep.subr.bf16.mxu0 0
    %347 = vmatpush1.bf16.msra.mxu0 0
    %348 = vmatprep.subr.bf16.mxu0 0
    %349 = vmatpush1.bf16.msra.mxu0 0
    %350 = vmatprep.subr.bf16.mxu0 0
    %351 = vmatpush1.bf16.msra.mxu0 0
    %352 = vmatprep.subr.bf16.mxu0 0
    %353 = vmatpush1.bf16.msra.mxu0 %v197
    %354 = vmatprep.subr.bf16.mxu0 0
    %355 = vmatpush1.bf16.msra.mxu0 %v196
    %356 = vmatprep.subr.bf16.mxu0 0
    %357 = vmatpush2.bf16.msra.mxu0 0
    %358 = vmatprep.subr.bf16.mxu0 0
    %359 = vmatpush2.bf16.msra.mxu0 0
    %360 = vmatprep.subr.bf16.mxu0 0
    %361 = vmatpush2.bf16.msra.mxu0 0
    %362 = vmatprep.subr.bf16.mxu0 0
    %363 = vmatpush2.bf16.msra.mxu0 0
    %364 = vmatprep.subr.bf16.mxu0 0
    %365 = vmatpush2.bf16.msra.mxu0 0
    %366 = vmatprep.subr.bf16.mxu0 0
    %367 = vmatpush2.bf16.msra.mxu0 0
    %368 = vmatprep.subr.bf16.mxu0 0
    %369 = vmatpush2.bf16.msra.mxu0 0
    %370 = vmatprep.subr.bf16.mxu0 0
    %371 = vmatpush2.bf16.msra.mxu0 0
    %372 = vmatprep.mubr.bf16.mxu0 0
    %373 = vmatmul.mubr.bf16.gmra.mxu0 %v338
    %v374 = vpop.f32.mrf.mxu0
    %v375 = vadd.f32 0.0, %v374
    %v376 = vpop.f32.mrf.mxu0
    %v377 = vpop.f32.mrf.mxu0
    %v378 = vpop.f32.mrf.mxu0
    %379 = vdwg.mxu0
    %v380 = vadd.f32 %v137, %v375
    %v381 = vtanh.pop %v380
    %v382 = vmul.f32 %v381, %v160
    %v383 = vadd.f32 %v382, %v165
    %v384 = vmul.f32 %v383, %v326
    %386 = vrot.lane.b32.xlu0 %v383, 64
    %v387 = vpop.permute.xlu0 %386
    %v389 = vmul.f32 %v383, %v387
    %391 = vrot.lane.b32.xlu0 %v389, 32
    %v392 = vpop.permute.xlu0 %391
    %v394 = vadd.f32 %v384, %v392
    %v395 = vtanh.pop %v394
    %397 = vrot.lane.b32.xlu0 %v395, 64
    %v398 = vpop.permute.xlu0 %397
    %v400 = vmul.f32 %v383, %v398
    %v401 = vpack.c.bf16 %v400, %v400
    %403 = vrot.lane.b32.xlu0 %v401, 32
    %v404 = vpop.permute.xlu0 %403
    %v406 = vsel %vm200, %v404, 0
    %408 = vmatprep.subr.bf16.mxu0 0
    %409 = vmatpush1.bf16.msra.mxu0 0
    %410 = vmatprep.subr.bf16.mxu0 0
    %411 = vmatpush1.bf16.msra.mxu0 0
    %412 = vmatprep.subr.bf16.mxu0 0
    %413 = vmatpush1.bf16.msra.mxu0 0
    %414 = vmatprep.subr.bf16.mxu0 0
    %415 = vmatpush1.bf16.msra.mxu0 0
    %416 = vmatprep.subr.bf16.mxu0 0
    %417 = vmatpush1.bf16.msra.mxu0 0
    %418 = vmatprep.subr.bf16.mxu0 0
    %419 = vmatpush1.bf16.msra.mxu0 0
    %420 = vmatprep.subr.bf16.mxu0 0
    %421 = vmatpush1.bf16.msra.mxu0 %v197
    %422 = vmatprep.subr.bf16.mxu0 0
    %423 = vmatpush1.bf16.msra.mxu0 %v196
    %424 = vmatprep.subr.bf16.mxu0 0
    %425 = vmatpush2.bf16.msra.mxu0 0
    %426 = vmatprep.subr.bf16.mxu0 0
    %427 = vmatpush2.bf16.msra.mxu0 0
    %428 = vmatprep.subr.bf16.mxu0 0
    %429 = vmatpush2.bf16.msra.mxu0 0
    %430 = vmatprep.subr.bf16.mxu0 0
    %431 = vmatpush2.bf16.msra.mxu0 0
    %432 = vmatprep.subr.bf16.mxu0 0
    %433 = vmatpush2.bf16.msra.mxu0 0
    %434 = vmatprep.subr.bf16.mxu0 0
    %435 = vmatpush2.bf16.msra.mxu0 0
    %436 = vmatprep.subr.bf16.mxu0 0
    %437 = vmatpush2.bf16.msra.mxu0 0
    %438 = vmatprep.subr.bf16.mxu0 0
    %439 = vmatpush2.bf16.msra.mxu0 0
    %440 = vmatprep.mubr.bf16.mxu0 0
    %441 = vmatmul.mubr.bf16.gmra.mxu0 %v406
    %v442 = vpop.f32.mrf.mxu0
    %v443 = vadd.f32 0.0, %v442
    %v444 = vpop.f32.mrf.mxu0
    %v445 = vpop.f32.mrf.mxu0
    %v446 = vpop.f32.mrf.mxu0
    %447 = vdwg.mxu0
    %v448 = vadd.f32 %v142, %v443
    %v449 = vtanh.pop %v448
    %v450 = vmul.f32 %v449, %v160
    %v451 = vadd.f32 %v450, %v165
    %v452 = vmul.f32 %v451, %v394
    %454 = vrot.lane.b32.xlu0 %v451, 64
    %v455 = vpop.permute.xlu0 %454
    %v457 = vmul.f32 %v451, %v455
    %459 = vrot.lane.b32.xlu0 %v457, 32
    %v460 = vpop.permute.xlu0 %459
    %v462 = vadd.f32 %v452, %v460
    %v463 = vtanh.pop %v462
    %465 = vrot.lane.b32.xlu0 %v463, 64
    %v466 = vpop.permute.xlu0 %465
    %v468 = vmul.f32 %v451, %v466
    %v469 = vpack.c.bf16 %v468, %v468
    %471 = vrot.lane.b32.xlu0 %v469, 32
    %v472 = vpop.permute.xlu0 %471
    %v474 = vsel %vm200, %v472, 0
    %476 = vmatprep.subr.bf16.mxu0 0
    %477 = vmatpush1.bf16.msra.mxu0 0
    %478 = vmatprep.subr.bf16.mxu0 0
    %479 = vmatpush1.bf16.msra.mxu0 0
    %480 = vmatprep.subr.bf16.mxu0 0
    %481 = vmatpush1.bf16.msra.mxu0 0
    %482 = vmatprep.subr.bf16.mxu0 0
    %483 = vmatpush1.bf16.msra.mxu0 0
    %484 = vmatprep.subr.bf16.mxu0 0
    %485 = vmatpush1.bf16.msra.mxu0 0
    %486 = vmatprep.subr.bf16.mxu0 0
    %487 = vmatpush1.bf16.msra.mxu0 0
    %488 = vmatprep.subr.bf16.mxu0 0
    %489 = vmatpush1.bf16.msra.mxu0 %v197
    %490 = vmatprep.subr.bf16.mxu0 0
    %491 = vmatpush1.bf16.msra.mxu0 %v196
    %492 = vmatprep.subr.bf16.mxu0 0
    %493 = vmatpush2.bf16.msra.mxu0 0
    %494 = vmatprep.subr.bf16.mxu0 0
    %495 = vmatpush2.bf16.msra.mxu0 0
    %496 = vmatprep.subr.bf16.mxu0 0
    %497 = vmatpush2.bf16.msra.mxu0 0
    %498 = vmatprep.subr.bf16.mxu0 0
    %499 = vmatpush2.bf16.msra.mxu0 0
    %500 = vmatprep.subr.bf16.mxu0 0
    %501 = vmatpush2.bf16.msra.mxu0 0
    %502 = vmatprep.subr.bf16.mxu0 0
    %503 = vmatpush2.bf16.msra.mxu0 0
    %504 = vmatprep.subr.bf16.mxu0 0
    %505 = vmatpush2.bf16.msra.mxu0 0
    %506 = vmatprep.subr.bf16.mxu0 0
    %507 = vmatpush2.bf16.msra.mxu0 0
    %508 = vmatprep.mubr.bf16.mxu0 0
    %509 = vmatmul.mubr.bf16.gmra.mxu0 %v474
    %v510 = vpop.f32.mrf.mxu0
    %v511 = vadd.f32 0.0, %v510
    %v512 = vpop.f32.mrf.mxu0
    %v513 = vpop.f32.mrf.mxu0
    %v514 = vpop.f32.mrf.mxu0
    %515 = vdwg.mxu0
    %v516 = vadd.f32 %v145, %v511
    %v517 = vtanh.pop %v516
    %v518 = vmul.f32 %v517, %v160
    %v519 = vadd.f32 %v518, %v165
    %v520 = vmul.f32 %v519, %v462
    %522 = vrot.lane.b32.xlu0 %v519, 64
    %v523 = vpop.permute.xlu0 %522
    %v525 = vmul.f32 %v519, %v523
    %527 = vrot.lane.b32.xlu0 %v525, 32
    %v528 = vpop.permute.xlu0 %527
    %v530 = vadd.f32 %v520, %v528
    %v531 = vtanh.pop %v530
    %533 = vrot.lane.b32.xlu0 %v531, 64
    %v534 = vpop.permute.xlu0 %533
    %v536 = vmul.f32 %v519, %v534
    %v537 = vpack.c.bf16 %v536, %v536
    %539 = vrot.lane.b32.xlu0 %v537, 32
    %v540 = vpop.permute.xlu0 %539
    %v542 = vsel %vm200, %v540, 0
    %544 = vmatprep.subr.bf16.mxu0 0
    %545 = vmatpush1.bf16.msra.mxu0 0
    %546 = vmatprep.subr.bf16.mxu0 0
    %547 = vmatpush1.bf16.msra.mxu0 0
    %548 = vmatprep.subr.bf16.mxu0 0
    %549 = vmatpush1.bf16.msra.mxu0 0
    %550 = vmatprep.subr.bf16.mxu0 0
    %551 = vmatpush1.bf16.msra.mxu0 0
    %552 = vmatprep.subr.bf16.mxu0 0
    %553 = vmatpush1.bf16.msra.mxu0 0
    %554 = vmatprep.subr.bf16.mxu0 0
    %555 = vmatpush1.bf16.msra.mxu0 0
    %556 = vmatprep.subr.bf16.mxu0 0
    %557 = vmatpush1.bf16.msra.mxu0 %v197
    %558 = vmatprep.subr.bf16.mxu0 0
    %559 = vmatpush1.bf16.msra.mxu0 %v196
    %560 = vmatprep.subr.bf16.mxu0 0
    %561 = vmatpush2.bf16.msra.mxu0 0
    %562 = vmatprep.subr.bf16.mxu0 0
    %563 = vmatpush2.bf16.msra.mxu0 0
    %564 = vmatprep.subr.bf16.mxu0 0
    %565 = vmatpush2.bf16.msra.mxu0 0
    %566 = vmatprep.subr.bf16.mxu0 0
    %567 = vmatpush2.bf16.msra.mxu0 0
    %568 = vmatprep.subr.bf16.mxu0 0
    %569 = vmatpush2.bf16.msra.mxu0 0
    %570 = vmatprep.subr.bf16.mxu0 0
    %571 = vmatpush2.bf16.msra.mxu0 0
    %572 = vmatprep.subr.bf16.mxu0 0
    %573 = vmatpush2.bf16.msra.mxu0 0
    %574 = vmatprep.subr.bf16.mxu0 0
    %575 = vmatpush2.bf16.msra.mxu0 0
    %576 = vmatprep.mubr.bf16.mxu0 0
    %577 = vmatmul.mubr.bf16.gmra.mxu0 %v542
    %v578 = vpop.f32.mrf.mxu0
    %v579 = vadd.f32 0.0, %v578
    %v580 = vpop.f32.mrf.mxu0
    %v581 = vpop.f32.mrf.mxu0
    %v582 = vpop.f32.mrf.mxu0
    %583 = vdwg.mxu0
    %v584 = vadd.f32 %v150, %v579
    %v585 = vtanh.pop %v584
    %v586 = vmul.f32 %v585, %v160
    %v587 = vadd.f32 %v586, %v165
    %v588 = vmul.f32 %v587, %v530
    %590 = vrot.lane.b32.xlu0 %v587, 64
    %v591 = vpop.permute.xlu0 %590
    %v593 = vmul.f32 %v587, %v591
    %595 = vrot.lane.b32.xlu0 %v593, 32
    %v596 = vpop.permute.xlu0 %595
    %v598 = vadd.f32 %v588, %v596
    %v599 = vtanh.pop %v598
    %601 = vrot.lane.b32.xlu0 %v599, 64
    %v602 = vpop.permute.xlu0 %601
    %v604 = vmul.f32 %v587, %v602
    %v605 = vpack.c.bf16 %v604, %v604
    %607 = vrot.lane.b32.xlu0 %v605, 32
    %v608 = vpop.permute.xlu0 %607
    %v610 = vsel %vm200, %v608, 0
    %612 = vmatprep.subr.bf16.mxu0 0
    %613 = vmatpush1.bf16.msra.mxu0 0
    %614 = vmatprep.subr.bf16.mxu0 0
    %615 = vmatpush1.bf16.msra.mxu0 0
    %616 = vmatprep.subr.bf16.mxu0 0
    %617 = vmatpush1.bf16.msra.mxu0 0
    %618 = vmatprep.subr.bf16.mxu0 0
    %619 = vmatpush1.bf16.msra.mxu0 0
    %620 = vmatprep.subr.bf16.mxu0 0
    %621 = vmatpush1.bf16.msra.mxu0 0
    %622 = vmatprep.subr.bf16.mxu0 0
    %623 = vmatpush1.bf16.msra.mxu0 0
    %624 = vmatprep.subr.bf16.mxu0 0
    %625 = vmatpush1.bf16.msra.mxu0 %v197
    %626 = vmatprep.subr.bf16.mxu0 0
    %627 = vmatpush1.bf16.msra.mxu0 %v196
    %628 = vmatprep.subr.bf16.mxu0 0
    %629 = vmatpush2.bf16.msra.mxu0 0
    %630 = vmatprep.subr.bf16.mxu0 0
    %631 = vmatpush2.bf16.msra.mxu0 0
    %632 = vmatprep.subr.bf16.mxu0 0
    %633 = vmatpush2.bf16.msra.mxu0 0
    %634 = vmatprep.subr.bf16.mxu0 0
    %635 = vmatpush2.bf16.msra.mxu0 0
    %636 = vmatprep.subr.bf16.mxu0 0
    %637 = vmatpush2.bf16.msra.mxu0 0
    %638 = vmatprep.subr.bf16.mxu0 0
    %639 = vmatpush2.bf16.msra.mxu0 0
    %640 = vmatprep.subr.bf16.mxu0 0
    %641 = vmatpush2.bf16.msra.mxu0 0
    %642 = vmatprep.subr.bf16.mxu0 0
    %643 = vmatpush2.bf16.msra.mxu0 0
    %644 = vmatprep.mubr.bf16.mxu0 0
    %645 = vmatmul.mubr.bf16.gmra.mxu0 %v610
    %v646 = vpop.f32.mrf.mxu0
    %v647 = vadd.f32 0.0, %v646
    %v648 = vpop.f32.mrf.mxu0
    %v649 = vpop.f32.mrf.mxu0
    %v650 = vpop.f32.mrf.mxu0
    %651 = vdwg.mxu0
    %v652 = vadd.f32 %v153, %v647
    %v653 = vtanh.pop %v652
    %v654 = vmul.f32 %v653, %v160
    %v655 = vadd.f32 %v654, %v165
    %v656 = vmul.f32 %v655, %v598
    %658 = vrot.lane.b32.xlu0 %v655, 64
    %v659 = vpop.permute.xlu0 %658
    %v661 = vmul.f32 %v655, %v659
    %663 = vrot.lane.b32.xlu0 %v661, 32
    %v664 = vpop.permute.xlu0 %663
    %v666 = vadd.f32 %v656, %v664
    %v667 = vtanh.pop %v666
    %669 = vrot.lane.b32.xlu0 %v667, 64
    %v670 = vpop.permute.xlu0 %669
    %v672 = vmul.f32 %v655, %v670
    %v673 = vpack.c.bf16 %v672, %v672
    %675 = vrot.lane.b32.xlu0 %v673, 32
    %v676 = vpop.permute.xlu0 %675
    %v681 = vunpack.c.l.b16 %v33
    %v682 = vunpack.c.l.b16 %v34
    %v683 = vunpack.c.l.b16 %v35
    %v684 = vunpack.c.l.b16 %v36
    %v685 = vpack.c.b16 %v682, %v681
    %v686 = vpack.c.b16 %v684, %v683
    %v690 = vsel %vm200, %v676, 0
    %692 = vmatprep.subr.bf16.mxu0 0
    %693 = vmatpush1.bf16.msra.mxu0 0
    %694 = vmatprep.subr.bf16.mxu0 0
    %695 = vmatpush1.bf16.msra.mxu0 0
    %696 = vmatprep.subr.bf16.mxu0 0
    %697 = vmatpush1.bf16.msra.mxu0 0
    %698 = vmatprep.subr.bf16.mxu0 0
    %699 = vmatpush1.bf16.msra.mxu0 0
    %700 = vmatprep.subr.bf16.mxu0 0
    %701 = vmatpush1.bf16.msra.mxu0 0
    %702 = vmatprep.subr.bf16.mxu0 0
    %703 = vmatpush1.bf16.msra.mxu0 0
    %704 = vmatprep.subr.bf16.mxu0 0
    %705 = vmatpush1.bf16.msra.mxu0 %v686
    %706 = vmatprep.subr.bf16.mxu0 0
    %707 = vmatpush1.bf16.msra.mxu0 %v685
    %708 = vmatprep.subr.bf16.mxu0 0
    %709 = vmatpush2.bf16.msra.mxu0 0
    %710 = vmatprep.subr.bf16.mxu0 0
    %711 = vmatpush2.bf16.msra.mxu0 0
    %712 = vmatprep.subr.bf16.mxu0 0
    %713 = vmatpush2.bf16.msra.mxu0 0
    %714 = vmatprep.subr.bf16.mxu0 0
    %715 = vmatpush2.bf16.msra.mxu0 0
    %716 = vmatprep.subr.bf16.mxu0 0
    %717 = vmatpush2.bf16.msra.mxu0 0
    %718 = vmatprep.subr.bf16.mxu0 0
    %719 = vmatpush2.bf16.msra.mxu0 0
    %720 = vmatprep.subr.bf16.mxu0 0
    %721 = vmatpush2.bf16.msra.mxu0 0
    %722 = vmatprep.subr.bf16.mxu0 0
    %723 = vmatpush2.bf16.msra.mxu0 0
    %724 = vmatprep.mubr.bf16.mxu0 0
    %725 = vmatmul.mubr.bf16.gmra.mxu0 %v690
    %v726 = vpop.f32.mrf.mxu0
    %v727 = vadd.f32 0.0, %v726
    %v728 = vpop.f32.mrf.mxu0
    %v729 = vpop.f32.mrf.mxu0
    %v730 = vpop.f32.mrf.mxu0
    %731 = vdwg.mxu0
    %v732 = vld [vmem:[#allocation2 + $0x1] sm:$0x1]
    %v733 = vlaneseq
    %v734 = vshrl.u32 %v733, 7
    %v735 = vsub.s32 0, %v734
    %v736 = vrot.slane %v732, %v735
    %v737 = vadd.f32 %v727, %v736
    %v738 = vtanh.pop %v737
    %v739 = vmul.f32 %v738, 0.5
    %v740 = vadd.f32 %v739, 0.5
    %vm741 = vcmask 31744
    %742 = vst.msk [vmem:[%s3] sm:$0xff] %vm741, %v740
    // Predicated region
    $region18: #{tpu_custom_call.1} parent=1 // pred_check
      _
    $region19: #{tpu_custom_call.1} parent=1 // pred_check_branch
      %744 = sbr.rel (0) target = $region21
    $region20: #{tpu_custom_call.1} parent=1 // pred_region
      _
    $region21: #{tpu_custom_call.1} parent=1 // pred_fallthru
      _
    // Predicated region
    $region22: #{tpu_custom_call.1} parent=1 // pred_check
      _
    $region23: #{tpu_custom_call.1} parent=1 // pred_check_branch
      %746 = sbr.rel (0) target = $region25
    $region24: #{tpu_custom_call.1} parent=1 // pred_region
      _
    $region25: #{tpu_custom_call.1} parent=1 // pred_fallthru
      _
    %747 = vsyncpa [#allocation3], 1

</llo_original>
